<compile_context>
chip_gen: v5e
topology: v5e:2x2
jax: 0.10.0
libtpu: 0.0.40
codegen_flags: <defaults>
</compile_context>

<pallas_src>
import functools

import jax
import jax.numpy as jnp
from jax.experimental import pallas as pl
from jax.experimental.pallas import tpu as pltpu


# ---------------------------------------------------------------------------
# helpers
# ---------------------------------------------------------------------------
def _round_up(x, m):
    return ((x + m - 1) // m) * m


# ---------------------------------------------------------------------------
# Fused Pallas matmul kernels (MXU):
#   out = maybe_relu((A @ B) * scale + bias [+ residual])
# ---------------------------------------------------------------------------
def _mm_bn_kernel(a_ref, b_ref, s_ref, c_ref, o_ref, acc_ref, *, relu):
    @pl.when(pl.program_id(2) == 0)
    def _():
        acc_ref[...] = jnp.zeros_like(acc_ref)

    acc_ref[...] += jnp.dot(a_ref[...], b_ref[...],
                            preferred_element_type=jnp.float32)

    @pl.when(pl.program_id(2) == pl.num_programs(2) - 1)
    def _():
        y = acc_ref[...] * s_ref[...] + c_ref[...]
        if relu:
            y = jnp.maximum(y, 0.0)
        o_ref[...] = y.astype(o_ref.dtype)


def _mm_bn_res_kernel(a_ref, b_ref, s_ref, c_ref, r_ref, o_ref, acc_ref):
    @pl.when(pl.program_id(2) == 0)
    def _():
        acc_ref[...] = jnp.zeros_like(acc_ref)

    acc_ref[...] += jnp.dot(a_ref[...], b_ref[...],
                            preferred_element_type=jnp.float32)

    @pl.when(pl.program_id(2) == pl.num_programs(2) - 1)
    def _():
        y = acc_ref[...] * s_ref[...] + c_ref[...] + r_ref[...].astype(jnp.float32)
        o_ref[...] = jnp.maximum(y, 0.0).astype(o_ref.dtype)


def _pick_tiles(M, K, N):
    # output-row tile (prefer >=2 tiles along M for megacore, avoid padding)
    if M % 256 == 0 and M >= 512:
        tm = 256
    elif M >= 128:
        tm = 128
    else:
        tm = _round_up(M, 8)
    Mp = _round_up(M, tm)
    # output-col tile (lane-dense, unmasked stores when possible)
    if N % 128 == 0:
        tn = 256 if (N % 256 == 0 and N >= 512) else 128
        Np = N
    elif N <= 256:
        tn, Np = N, N            # single full-width block (equals full dim)
    else:
        tn, Np = 128, _round_up(N, 128)
    # reduction tile: deepest 128-multiple divisor of Kp, capped at 2048
    if K < 128 and K % 8 == 0:
        tk, Kp = K, K            # no pad needed, single K block
    else:
        Kp = _round_up(K, 128)
        tk = 128
        cand = 256
        while cand <= min(Kp, 2048):
            if Kp % cand == 0:
                tk = cand
            cand += 128
    return tm, tn, tk, Mp, Np, Kp


def matmul_bn_act(a, b, scale, bias, relu=True, residual=None,
                  out_dtype=jnp.float32):
    """(M, K) @ (K, N) with fused folded-BN affine (+ReLU, +residual) epilogue.

    Operands are cast to bf16 for the MXU; accumulation and the epilogue run
    in f32.  scale/bias: (1, N) f32.  residual: (M, N), added before the ReLU.
    Only pads operands when shapes are not already tile-aligned.
    """
    M, K = a.shape
    K2, N = b.shape
    assert K == K2
    tm, tn, tk, Mp, Np, Kp = _pick_tiles(M, K, N)

    a = a.astype(jnp.bfloat16)
    b = b.astype(jnp.bfloat16)
    scale = scale.reshape(1, N).astype(jnp.float32)
    bias = bias.reshape(1, N).astype(jnp.float32)

    if (Mp, Kp) != (M, K):
        a = jnp.pad(a, ((0, Mp - M), (0, Kp - K)))
    if (Kp, Np) != (K, N):
        b = jnp.pad(b, ((0, Kp - K), (0, Np - N)))
    if Np != N:
        scale = jnp.pad(scale, ((0, 0), (0, Np - N)))
        bias = jnp.pad(bias, ((0, 0), (0, Np - N)))

    grid = (Mp // tm, Np // tn, Kp // tk)
    a_spec = pl.BlockSpec((tm, tk), lambda i, j, k: (i, k))
    b_spec = pl.BlockSpec((tk, tn), lambda i, j, k: (k, j))
    v_spec = pl.BlockSpec((1, tn), lambda i, j, k: (0, j))
    o_spec = pl.BlockSpec((tm, tn), lambda i, j, k: (i, j))

    if residual is None:
        kernel = functools.partial(_mm_bn_kernel, relu=relu)
        in_specs = [a_spec, b_spec, v_spec, v_spec]
        args = (a, b, scale, bias)
    else:
        r = residual.astype(jnp.bfloat16)
        if (Mp, Np) != (M, N):
            r = jnp.pad(r, ((0, Mp - M), (0, Np - N)))
        kernel = _mm_bn_res_kernel
        in_specs = [a_spec, b_spec, v_spec, v_spec,
                    pl.BlockSpec((tm, tn), lambda i, j, k: (i, j))]
        args = (a, b, scale, bias, r)

    out = pl.pallas_call(
        kernel,
        out_shape=jax.ShapeDtypeStruct((Mp, Np), out_dtype),
        grid_spec=pltpu.PrefetchScalarGridSpec(
            num_scalar_prefetch=0,
            grid=grid,
            in_specs=in_specs,
            out_specs=o_spec,
            scratch_shapes=[pltpu.VMEM((tm, tn), jnp.float32)]),
        compiler_params=pltpu.CompilerParams(
            dimension_semantics=("parallel", "parallel", "arbitrary")),
    )(*args)

    if (Mp, Np) != (M, N):
        out = out[:M, :N]
    return out


# ---------------------------------------------------------------------------
# Pallas maxpool 3x3/stride2/pad1 -- phase-split input, running max in-kernel
# ---------------------------------------------------------------------------
def _maxpool_kernel(ee_ref, eo_ref, oe_ref, oo_ref, o_ref):
    oh, ow = o_ref.shape[1], o_ref.shape[2]
    ee = ee_ref[0]
    eo = eo_ref[0]
    oe = oe_ref[0]
    oo = oo_ref[0]
    m = ee[:oh, :ow]                              # tap (0,0)
    m = jnp.maximum(m, eo[:oh, :ow])              # tap (0,1)
    m = jnp.maximum(m, ee[:oh, 1:ow + 1])         # tap (0,2)
    m = jnp.maximum(m, oe[:oh, :ow])              # tap (1,0)
    m = jnp.maximum(m, oo[:oh, :ow])              # tap (1,1)
    m = jnp.maximum(m, oe[:oh, 1:ow + 1])         # tap (1,2)
    m = jnp.maximum(m, ee[1:oh + 1, :ow])         # tap (2,0)
    m = jnp.maximum(m, eo[1:oh + 1, :ow])         # tap (2,1)
    m = jnp.maximum(m, ee[1:oh + 1, 1:ow + 1])    # tap (2,2)
    o_ref[0] = m


def maxpool_3x3_s2(x):
    """x: (B, H, W, C) NHWC -> 3x3 / stride 2 / pad 1 max pool (Pallas)."""
    B, H, W, C = x.shape
    OH = (H - 1) // 2 + 1
    OW = (W - 1) // 2 + 1
    neg = float(jnp.finfo(x.dtype).min)
    # pad so both even/odd row/col phases are exactly (OH+1, OW+1)
    hp, wp = 2 * (OH + 1), 2 * (OW + 1)
    xp = jnp.pad(x, ((0, 0), (1, hp - H - 1), (1, wp - W - 1), (0, 0)),
                 constant_values=neg)
    x_ee = xp[:, 0::2, 0::2, :]
    x_eo = xp[:, 0::2, 1::2, :]
    x_oe = xp[:, 1::2, 0::2, :]
    x_oo = xp[:, 1::2, 1::2, :]
    phase_spec = pl.BlockSpec((1, OH + 1, OW + 1, C), lambda b: (b, 0, 0, 0))
    return pl.pallas_call(
        _maxpool_kernel,
        out_shape=jax.ShapeDtypeStruct((B, OH, OW, C), x.dtype),
        grid=(B,),
        in_specs=[phase_spec] * 4,
        out_specs=pl.BlockSpec((1, OH, OW, C), lambda b: (b, 0, 0, 0)),
        compiler_params=pltpu.CompilerParams(
            dimension_semantics=("parallel",)),
    )(x_ee, x_eo, x_oe, x_oo)


# ---------------------------------------------------------------------------
# Pallas global average pool (adaptive avg pool to 1x1), tiled over batch
# ---------------------------------------------------------------------------
def _avgpool_kernel(x_ref, o_ref):
    o_ref[0] = jnp.mean(x_ref[0].astype(jnp.float32), axis=0, keepdims=True)


def global_avgpool(x):
    """x: (B, H, W, C) -> (B, C) f32."""
    B, H, W, C = x.shape
    xr = x.reshape(B, H * W, C)
    out = pl.pallas_call(
        _avgpool_kernel,
        out_shape=jax.ShapeDtypeStruct((B, 1, C), jnp.float32),
        grid=(B,),
        in_specs=[pl.BlockSpec((1, H * W, C), lambda b: (b, 0, 0))],
        out_specs=pl.BlockSpec((1, 1, C), lambda b: (b, 0, 0)),
        compiler_params=pltpu.CompilerParams(
            dimension_semantics=("parallel",)),
    )(xr)
    return out.reshape(B, C)


# ---------------------------------------------------------------------------
# conv = (reshape | im2col) + fused Pallas matmul/BN(+ReLU/+residual) kernel
# ---------------------------------------------------------------------------
def _im2col(x, kh, kw, stride, pad):
    B, H, W, C = x.shape
    OH = (H + 2 * pad - kh) // stride + 1
    OW = (W + 2 * pad - kw) // stride + 1
    xp = jnp.pad(x, ((0, 0), (pad, pad), (pad, pad), (0, 0)))
    pats = []
    for i in range(kh):
        for j in range(kw):
            pats.append(xp[:, i::stride, j::stride, :][:, :OH, :OW, :])
    cols = jnp.stack(pats, axis=3)                       # (B, OH, OW, kh*kw, C)
    return cols.reshape(B * OH * OW, kh * kw * C), OH, OW


def conv_bn_act(x, w, bn, kh, kw, stride, pad, relu=True, residual=None,
                out_dtype=jnp.bfloat16):
    """x NHWC; w: (kh*kw*Cin, Cout); bn: (scale, bias) each (1, Cout)."""
    B, H, W, Cin = x.shape
    if kh == 1 and kw == 1 and pad == 0:
        if stride != 1:
            x = x[:, ::stride, ::stride, :]
        OH, OW = x.shape[1], x.shape[2]
        cols = x.reshape(B * OH * OW, Cin)               # zero-copy
    else:
        cols, OH, OW = _im2col(x, kh, kw, stride, pad)
    scale, bias = bn
    res2d = None if residual is None else residual.reshape(B * OH * OW, -1)
    y = matmul_bn_act(cols, w, scale, bias, relu=relu, residual=res2d,
                      out_dtype=out_dtype)
    return y.reshape(B, OH, OW, -1)


# ---------------------------------------------------------------------------
# parameter init (deterministic, synthetic) and ResNet-50 forward
# ---------------------------------------------------------------------------
_LAYER_CFG = [(64, 3, 1), (128, 4, 2), (256, 6, 2), (512, 3, 2)]


def _conv_w(key, kh, kw, cin, cout):
    std = (2.0 / (kh * kw * cin)) ** 0.5
    w = jax.random.normal(key, (kh, kw, cin, cout), jnp.float32) * std
    return w.reshape(kh * kw * cin, cout)


def _bn_p(key, c):
    k1, k2 = jax.random.split(key)
    scale = 1.0 + 0.1 * jax.random.normal(k1, (1, c), jnp.float32)
    bias = 0.1 * jax.random.normal(k2, (1, c), jnp.float32)
    return scale, bias


def init_encoder_params(key, projection_layer=128):
    keys = iter(jax.random.split(key, 256))
    nk = lambda: next(keys)
    params = {
        "conv1_w": _conv_w(nk(), 7, 7, 3, 64),
        "bn1": _bn_p(nk(), 64),
        "layers": [],
    }
    inplanes = 64
    for planes, nblocks, stride in _LAYER_CFG:
        blocks = []
        for bidx in range(nblocks):
            s = stride if bidx == 0 else 1
            blk = {
                "conv1_w": _conv_w(nk(), 1, 1, inplanes, planes),
                "bn1": _bn_p(nk(), planes),
                "conv2_w": _conv_w(nk(), 3, 3, planes, planes),
                "bn2": _bn_p(nk(), planes),
                "conv3_w": _conv_w(nk(), 1, 1, planes, planes * 4),
                "bn3": _bn_p(nk(), planes * 4),
            }
            if s != 1 or inplanes != planes * 4:
                blk["down_w"] = _conv_w(nk(), 1, 1, inplanes, planes * 4)
                blk["down_bn"] = _bn_p(nk(), planes * 4)
            blocks.append(blk)
            inplanes = planes * 4
        params["layers"].append(blocks)
    bound = 1.0 / (2048 ** 0.5)
    params["mlp_w"] = jax.random.uniform(
        nk(), (2048, projection_layer), jnp.float32, -bound, bound)
    params["mlp_b"] = jax.random.uniform(
        nk(), (1, projection_layer), jnp.float32, -bound, bound)
    return params


def encoder_forward(params, x_nchw, training=False):
    # layout: input NCHW (B, 3, H, W); internal NHWC bf16; output f32
    #         (B, 2048) features or (B, projection) when training=True.
    x = jnp.transpose(x_nchw, (0, 2, 3, 1)).astype(jnp.bfloat16)

    # stem: conv 7x7/2 + BN + ReLU (fused) + maxpool 3x3/2
    x = conv_bn_act(x, params["conv1_w"], params["bn1"], 7, 7, 2, 3)
    x = maxpool_3x3_s2(x)

    # residual stages (bottleneck blocks; every conv+BN(+ReLU/+add) is fused)
    for (planes, nblocks, stride), blocks in zip(_LAYER_CFG, params["layers"]):
        for bidx, blk in enumerate(blocks):
            s = stride if bidx == 0 else 1
            identity = x
            out = conv_bn_act(x, blk["conv1_w"], blk["bn1"], 1, 1, 1, 0)
            out = conv_bn_act(out, blk["conv2_w"], blk["bn2"], 3, 3, s, 1)
            if "down_w" in blk:
                identity = conv_bn_act(x, blk["down_w"], blk["down_bn"],
                                       1, 1, s, 0, relu=False)
            x = conv_bn_act(out, blk["conv3_w"], blk["bn3"], 1, 1, 1, 0,
                            residual=identity)

    # adaptive avg pool to 1x1 + flatten(start_dim=1)
    feats = global_avgpool(x)                            # (B, 2048) f32

    if training:
        proj = params["mlp_w"].shape[1]
        ones = jnp.ones((1, proj), jnp.float32)
        return matmul_bn_act(feats, params["mlp_w"], ones, params["mlp_b"],
                             relu=False, out_dtype=jnp.float32)
    return feats


# ---------------------------------------------------------------------------
if __name__ == "__main__":
    key = jax.random.PRNGKey(0)
    pkey, xkey = jax.random.split(key)

    params = init_encoder_params(pkey, projection_layer=128)
    # small input consistent with the module: NCHW, 3 channels, 32x32 spatial
    x = jax.random.normal(xkey, (2, 3, 32, 32), jnp.float32)

    feats = encoder_forward(params, x, training=False)   # default: no MLP head
    jax.block_until_ready(feats)
    assert feats.shape == (2, 2048), feats.shape
    assert bool(jnp.all(jnp.isfinite(feats)))

    proj = encoder_forward(params, x, training=True)     # exercise the MLP head
    jax.block_until_ready(proj)
    assert proj.shape == (2, 128), proj.shape
    assert bool(jnp.all(jnp.isfinite(proj)))

    print("KERNEL_OK")
</pallas_src>

<mosaic_0001>
module attributes {stable_mosaic.version = 11 : i64} {
  func.func @_mm_bn_kernel(%arg0: i32, %arg1: i32, %arg2: i32, %arg3: memref<256x256xbf16, #tpu.memory_space<vmem>>, %arg4: memref<256x64xbf16, #tpu.memory_space<vmem>>, %arg5: memref<1x64xf32, #tpu.memory_space<vmem>>, %arg6: memref<1x64xf32, #tpu.memory_space<vmem>>, %arg7: memref<256x64xbf16, #tpu.memory_space<vmem>>, %arg8: memref<256x64xf32, #tpu.memory_space<vmem>>) attributes {dimension_semantics = [#tpu.dimension_semantics<parallel>, #tpu.dimension_semantics<parallel>, #tpu.dimension_semantics<arbitrary>], iteration_bounds = array<i64: 2, 1, 1>, scalar_prefetch = 0 : i64, scratch_operands = 1 : i64, tpu.core_type = #tpu.core_type<tc>, window_params = [{transform_indices = @transform_0, window_bounds = array<i64: 256, 256>}, {transform_indices = @transform_1, window_bounds = array<i64: 256, 64>}, {transform_indices = @transform_2, window_bounds = array<i64: 1, 64>}, {transform_indices = @transform_3, window_bounds = array<i64: 1, 64>}, {transform_indices = @transform_4, window_bounds = array<i64: 256, 64>}]} {
    %c0_i32 = arith.constant 0 : i32
    %0 = arith.cmpi eq, %arg2, %c0_i32 : i32
    %1 = arith.extui %0 : i1 to i32
    %c0_i32_0 = arith.constant 0 : i32
    %2 = arith.cmpi ne, %1, %c0_i32_0 : i32
    scf.if %2 {
      %cst_10 = arith.constant 0.000000e+00 : f32
      %12 = vector.broadcast %cst_10 : f32 to vector<256x64xf32>
      %c0_11 = arith.constant 0 : index
      %c0_12 = arith.constant 0 : index
      %13 = vector.load %arg8[%c0_11, %c0_12] : memref<256x64xf32, #tpu.memory_space<vmem>>, vector<256x64xf32>
      tpu.vector_store %arg8[%c0_11, %c0_12], %12 {strides = array<i32>} : memref<256x64xf32, #tpu.memory_space<vmem>>, vector<256x64xf32>,
    } else {
    }
    %c0 = arith.constant 0 : index
    %c0_1 = arith.constant 0 : index
    %3 = vector.load %arg8[%c0, %c0_1] : memref<256x64xf32, #tpu.memory_space<vmem>>, vector<256x64xf32>
    %c0_2 = arith.constant 0 : index
    %c0_3 = arith.constant 0 : index
    %4 = vector.load %arg3[%c0_2, %c0_3] : memref<256x256xbf16, #tpu.memory_space<vmem>>, vector<256x256xbf16>
    %c0_4 = arith.constant 0 : index
    %c0_5 = arith.constant 0 : index
    %5 = vector.load %arg4[%c0_4, %c0_5] : memref<256x64xbf16, #tpu.memory_space<vmem>>, vector<256x64xbf16>
    %cst = arith.constant dense<0.000000e+00> : vector<256x64xf32>
    %6 = tpu.matmul %4, %5, %cst {dimension_numbers = #tpu.dot_dimension_numbers<[1], [0], [0], [1], [0, 0, 1, 1], [], []>} : vector<256x256xbf16>, vector<256x64xbf16>, vector<256x64xf32> -> vector<256x64xf32>
    %7 = arith.addf %3, %6 : vector<256x64xf32>
    %c0_6 = arith.constant 0 : index
    %c0_7 = arith.constant 0 : index
    %8 = vector.load %arg8[%c0_6, %c0_7] : memref<256x64xf32, #tpu.memory_space<vmem>>, vector<256x64xf32>
    tpu.vector_store %arg8[%c0_6, %c0_7], %7 {strides = array<i32>} : memref<256x64xf32, #tpu.memory_space<vmem>>, vector<256x64xf32>,
    %c0_i32_8 = arith.constant 0 : i32
    %9 = arith.cmpi eq, %arg2, %c0_i32_8 : i32
    %10 = arith.extui %9 : i1 to i32
    %c0_i32_9 = arith.constant 0 : i32
    %11 = arith.cmpi ne, %10, %c0_i32_9 : i32
    scf.if %11 {
      %c0_10 = arith.constant 0 : index
      %c0_11 = arith.constant 0 : index
      %12 = vector.load %arg8[%c0_10, %c0_11] : memref<256x64xf32, #tpu.memory_space<vmem>>, vector<256x64xf32>
      %c0_12 = arith.constant 0 : index
      %c0_13 = arith.constant 0 : index
      %13 = vector.load %arg5[%c0_12, %c0_13] : memref<1x64xf32, #tpu.memory_space<vmem>>, vector<1x64xf32>
      %14 = vector.broadcast %13 : vector<1x64xf32> to vector<256x64xf32>
      %15 = arith.mulf %12, %14 : vector<256x64xf32>
      %c0_14 = arith.constant 0 : index
      %c0_15 = arith.constant 0 : index
      %16 = vector.load %arg6[%c0_14, %c0_15] : memref<1x64xf32, #tpu.memory_space<vmem>>, vector<1x64xf32>
      %17 = vector.broadcast %16 : vector<1x64xf32> to vector<256x64xf32>
      %18 = arith.addf %15, %17 : vector<256x64xf32>
      %cst_16 = arith.constant 0.000000e+00 : f32
      %19 = vector.broadcast %cst_16 : f32 to vector<256x64xf32>
      %20 = arith.maximumf %18, %19 : vector<256x64xf32>
      %21 = arith.truncf %20 : vector<256x64xf32> to vector<256x64xbf16>
      %c0_17 = arith.constant 0 : index
      %c0_18 = arith.constant 0 : index
      %22 = vector.load %arg7[%c0_17, %c0_18] : memref<256x64xbf16, #tpu.memory_space<vmem>>, vector<256x64xbf16>
      tpu.vector_store %arg7[%c0_17, %c0_18], %21 {strides = array<i32>} : memref<256x64xbf16, #tpu.memory_space<vmem>>, vector<256x64xbf16>,
    } else {
    }
    return
  }
  func.func @transform_0(%arg0: i32, %arg1: i32, %arg2: i32) -> (i32, i32) {
    %c0_i32 = arith.constant 0 : i32
    return %arg0, %arg2 : i32, i32
  }
  func.func @transform_1(%arg0: i32, %arg1: i32, %arg2: i32) -> (i32, i32) {
    %c0_i32 = arith.constant 0 : i32
    return %arg2, %arg1 : i32, i32
  }
  func.func @transform_2(%arg0: i32, %arg1: i32, %arg2: i32) -> (i32, i32) {
    %c0_i32 = arith.constant 0 : i32
    %c0_i32_0 = arith.constant 0 : i32
    return %c0_i32, %arg1 : i32, i32
  }
  func.func @transform_3(%arg0: i32, %arg1: i32, %arg2: i32) -> (i32, i32) {
    %c0_i32 = arith.constant 0 : i32
    %c0_i32_0 = arith.constant 0 : i32
    return %c0_i32, %arg1 : i32, i32
  }
  func.func @transform_4(%arg0: i32, %arg1: i32, %arg2: i32) -> (i32, i32) {
    %c0_i32 = arith.constant 0 : i32
    return %arg0, %arg1 : i32, i32
  }
}

</mosaic_0001>

<llo_original>
// kernel: tpu_custom_call.1
$region0: #{tpu_custom_call.1}
  #allocation0 [shape = 'u32[]', space=smem, size = 0x4, offset = 0x4, fixed_abs, tag = 'smem constant byte address 0x4 - core index']
  #allocation1 [shape = 'u32[72,128]{1,0:T(1,128)}', space=vmem, size = 0x9000, scoped, tag = 'internal scratch']
  #allocation2 [shape = 'f32[256,64]{1,0:T(8,128)}', space=vmem, size = 0x20000, scoped, tag = 'scratch operand']
  %s0 = inlined_call_operand.hbm [shape: bf16[512,256], index: 0, kind: input, shape index: {}]
  %s1 = inlined_call_operand.vmem [shape: bf16[256,64], index: 1, kind: input, shape index: {}]
  %s2 = inlined_call_operand.vmem [shape: f32[1,64], index: 2, kind: input, shape index: {}]
  %s3 = inlined_call_operand.vmem [shape: f32[1,64], index: 3, kind: input, shape index: {}]
  %s4 = inlined_call_operand.vmem [shape: bf16[512,64], index: 4, kind: output, shape index: {}]
  %s5 = sld [smem:[#allocation0]]
  $region61: #{tpu_custom_call.1} parent=0
    _
  %s7 = ssub.s32 1, %s5
  %s8 = scalar_select 0, %s7, %s5
  $region1: #{tpu_custom_call.1} parent=0
    #allocation3 [shape = 'u8[262144]{0}', space=vmem, size = 0x40000, scoped, tag = 'input window, operand 0']
    #allocation4 [shape = 's32[2]{0}', space=sflag, size = 0x8, scoped, tag = 'scoped memory for tpu_custom_call.1']
    %9 = vsyncpa [#allocation4], 0
    %s10 = scalar_lea.sflag [#allocation4], 1
    %11 = vsyncpa %s10, 0
    loop: start=0, step=1, limit=4
    $region2: #{tpu_custom_call.1} parent=1 // loop_pre_header
      _
    $region3: #{tpu_custom_call.1} parent=1 // loop_header
      %s13 = sphi 0, %s17
      %p14 = scmp.ge.s32.totalorder %s13, 4
      %s20 = sphi 0, %s39
      %s21 = sphi 0, %s35
      %s22 = sphi 0, %s31
      %s23 = sphi 0, %s20
      %s24 = sphi 0, %s21
      %s25 = sphi 0, %s22
      %s26 = sphi 0, %s23
      %s27 = sphi 0, %s24
      %s28 = sphi 0, %s25
      %s44 = sphi 0, %s46
      %s47 = sphi 0, %s44
      %s48 = sphi 0, %s47
      %s64 = sphi 0, %s48
      %s72 = sphi 0, %s74
      %s75 = sphi 0, %s72
      %s76 = sphi 0, %s75
      %s92 = sphi 0, %s76
      %s98 = sphi 0, %s100
      %s101 = sphi 0, %s98
      %s102 = sphi 0, %s101
      %s118 = sphi 0, %s102
      %s124 = sphi 0, %s126
      %s127 = sphi 0, %s124
      %s128 = sphi 0, %s127
      %s144 = sphi 0, %s128
      %s152 = sphi 0, %s154
      %s155 = sphi 0, %s152
      %s156 = sphi 0, %s155
      %s172 = sphi 0, %s156
    $region4: #{tpu_custom_call.1} parent=1 // loop_header_branch
      %16 = sbr.rel (%p14) target = $region8
    $region5: #{tpu_custom_call.1} parent=1 // loop_body
      %s18 = ssub.s32 %s13, 1
      %s19 = ssub.s32 %s13, 2
      %s29 = sadd.s32 1, %s22
      %p30 = scmp.ge.s32.totalorder %s29, 1
      %s31 = scalar_select %p30, 0, %s29
      %s32 = sadd.s32 1, %s21
      %s33 = scalar_select %p30, %s32, %s21
      %p34 = scmp.ge.s32.totalorder %s33, 1
      %s35 = scalar_select %p34, 0, %s33
      %s36 = sadd.s32 1, %s20
      %s37 = scalar_select %p34, %s36, %s20
      %p38 = scmp.ge.s32.totalorder %s37, 2
      %s39 = scalar_select %p38, 0, %s37
      %s40 = ssub.s32 %s20, %s39
      %s41 = ssub.s32 %s22, %s31
      %s42 = sor.u32 %s40, %s41
      %p43 = scmp.eq.s32.totalorder %s42, 0
      %s45 = sadd.s32 %s44, 1
      %s46 = scalar_select %p43, %s44, %s45
      %p49 = pneg %p43
      %p50 = scmp.eq.s32.totalorder %s13, 1
      %p51 = por %p49, %p50
      %p52 = scmp.ne.s32.totalorder %s44, %s47
      %p53 = scmp.eq.s32.totalorder %s13, 0
      %p54 = por %p52, %p53
      %p55 = scmp.ne.s32.totalorder %s44, %s47
      %p56 = scmp.eq.s32.totalorder %s18, 1
      %p57 = por %p55, %p56
      %p58 = scmp.ne.s32.totalorder %s47, %s48
      %p59 = scmp.eq.s32.totalorder %s18, 0
      %p60 = por %p58, %p59
      %p61 = scmp.ne.s32.totalorder %s47, %s48
      %p62 = scmp.eq.s32.totalorder %s19, 1
      %p63 = por %p61, %p62
      %p65 = scmp.ne.s32.totalorder %s48, %s64
      %p66 = scmp.eq.s32.totalorder %s19, 0
      %p67 = por %p65, %p66
      %s68 = ssub.s32 %s22, %s31
      %s69 = ssub.s32 %s21, %s35
      %s70 = sor.u32 %s68, %s69
      %p71 = scmp.eq.s32.totalorder %s70, 0
      %s73 = sadd.s32 %s72, 1
      %s74 = scalar_select %p71, %s72, %s73
      %p77 = pneg %p71
      %p78 = scmp.eq.s32.totalorder %s13, 1
      %p79 = por %p77, %p78
      %p80 = scmp.ne.s32.totalorder %s72, %s75
      %p81 = scmp.eq.s32.totalorder %s13, 0
      %p82 = por %p80, %p81
      %p83 = scmp.ne.s32.totalorder %s72, %s75
      %p84 = scmp.eq.s32.totalorder %s18, 1
      %p85 = por %p83, %p84
      %p86 = scmp.ne.s32.totalorder %s75, %s76
      %p87 = scmp.eq.s32.totalorder %s18, 0
      %p88 = por %p86, %p87
      %p89 = scmp.ne.s32.totalorder %s75, %s76
      %p90 = scmp.eq.s32.totalorder %s19, 1
      %p91 = por %p89, %p90
      %p93 = scmp.ne.s32.totalorder %s76, %s92
      %p94 = scmp.eq.s32.totalorder %s19, 0
      %p95 = por %p93, %p94
      %s96 = ssub.s32 %s21, %s35
      %p97 = scmp.eq.s32.totalorder %s96, 0
      %s99 = sadd.s32 %s98, 1
      %s100 = scalar_select %p97, %s98, %s99
      %p103 = pneg %p97
      %p104 = scmp.eq.s32.totalorder %s13, 1
      %p105 = por %p103, %p104
      %p106 = scmp.ne.s32.totalorder %s98, %s101
      %p107 = scmp.eq.s32.totalorder %s13, 0
      %p108 = por %p106, %p107
      %p109 = scmp.ne.s32.totalorder %s98, %s101
      %p110 = scmp.eq.s32.totalorder %s18, 1
      %p111 = por %p109, %p110
      %p112 = scmp.ne.s32.totalorder %s101, %s102
      %p113 = scmp.eq.s32.totalorder %s18, 0
      %p114 = por %p112, %p113
      %p115 = scmp.ne.s32.totalorder %s101, %s102
      %p116 = scmp.eq.s32.totalorder %s19, 1
      %p117 = por %p115, %p116
      %p119 = scmp.ne.s32.totalorder %s102, %s118
      %p120 = scmp.eq.s32.totalorder %s19, 0
      %p121 = por %p119, %p120
      %s122 = ssub.s32 %s21, %s35
      %p123 = scmp.eq.s32.totalorder %s122, 0
      %s125 = sadd.s32 %s124, 1
      %s126 = scalar_select %p123, %s124, %s125
      %p129 = pneg %p123
      %p130 = scmp.eq.s32.totalorder %s13, 1
      %p131 = por %p129, %p130
      %p132 = scmp.ne.s32.totalorder %s124, %s127
      %p133 = scmp.eq.s32.totalorder %s13, 0
      %p134 = por %p132, %p133
      %p135 = scmp.ne.s32.totalorder %s124, %s127
      %p136 = scmp.eq.s32.totalorder %s18, 1
      %p137 = por %p135, %p136
      %p138 = scmp.ne.s32.totalorder %s127, %s128
      %p139 = scmp.eq.s32.totalorder %s18, 0
      %p140 = por %p138, %p139
      %p141 = scmp.ne.s32.totalorder %s127, %s128
      %p142 = scmp.eq.s32.totalorder %s19, 1
      %p143 = por %p141, %p142
      %p145 = scmp.ne.s32.totalorder %s128, %s144
      %p146 = scmp.eq.s32.totalorder %s19, 0
      %p147 = por %p145, %p146
      %s148 = ssub.s32 %s20, %s39
      %s149 = ssub.s32 %s21, %s35
      %s150 = sor.u32 %s148, %s149
      %p151 = scmp.eq.s32.totalorder %s150, 0
      %s153 = sadd.s32 %s152, 1
      %s154 = scalar_select %p151, %s152, %s153
      %p157 = pneg %p151
      %p158 = scmp.eq.s32.totalorder %s13, 1
      %p159 = por %p157, %p158
      %p160 = scmp.ne.s32.totalorder %s152, %s155
      %p161 = scmp.eq.s32.totalorder %s13, 0
      %p162 = por %p160, %p161
      %p163 = scmp.ne.s32.totalorder %s152, %s155
      %p164 = scmp.eq.s32.totalorder %s18, 1
      %p165 = por %p163, %p164
      %p166 = scmp.ne.s32.totalorder %s155, %s156
      %p167 = scmp.eq.s32.totalorder %s18, 0
      %p168 = por %p166, %p167
      %p169 = scmp.ne.s32.totalorder %s155, %s156
      %p170 = scmp.eq.s32.totalorder %s19, 1
      %p171 = por %p169, %p170
      %p173 = scmp.ne.s32.totalorder %s156, %s172
      %p174 = scmp.eq.s32.totalorder %s19, 0
      %p175 = por %p173, %p174
      %p176 = scmp.le.s32.totalorder 1, %s13
      %p177 = scmp.lt.s32.totalorder %s13, 3
      %p178 = pnand %p176, %p177
      %p179 = pneg %p178
      // Predicated region
      $region9: #{tpu_custom_call.1} parent=5 // pred_check
        _
      $region10: #{tpu_custom_call.1} parent=5 // pred_check_branch
        %181 = sbr.rel (%p178) target = $region12
      $region11: #{tpu_custom_call.1} parent=5 // pred_region
        %s182 = ssub.s32 %s13, 1
        // Predicated region
        $region13: #{tpu_custom_call.1} parent=11 // pred_check
          %p183 = pneg %p88
        $region14: #{tpu_custom_call.1} parent=11 // pred_check_branch
          %185 = sbr.rel (%p183) target = $region16
        $region15: #{tpu_custom_call.1} parent=11 // pred_region
          %s186 = smul.u32 32, %s25
          %p187 = scmp.lt.s32.totalorder %s186, 31
          %s188 = scalar_select %p187, %s186, 31
          %p189 = scmp.lt.s32.totalorder %s24, 0
          %s190 = scalar_select %p189, %s24, 0
          %s191 = sadd.s32 %s190, %s188
          %s192 = smul.addr %s191, 4
          %s193 = scalar_lea.vmem %s1, %s192
          %s194 = smul.u32 32, %s25
        $region16: #{tpu_custom_call.1} parent=11 // pred_fallthru
          _
        // Predicated region
        $region17: #{tpu_custom_call.1} parent=11 // pred_check
          %p195 = pneg %p114
        $region18: #{tpu_custom_call.1} parent=11 // pred_check_branch
          %197 = sbr.rel (%p195) target = $region20
        $region19: #{tpu_custom_call.1} parent=11 // pred_region
          %p198 = scmp.lt.s32.totalorder %s24, 0
          %s199 = scalar_select %p198, %s24, 0
          %s200 = scalar_lea.vmem %s2, %s199
        $region20: #{tpu_custom_call.1} parent=11 // pred_fallthru
          _
        // Predicated region
        $region21: #{tpu_custom_call.1} parent=11 // pred_check
          %p201 = pneg %p140
        $region22: #{tpu_custom_call.1} parent=11 // pred_check_branch
          %203 = sbr.rel (%p201) target = $region24
        $region23: #{tpu_custom_call.1} parent=11 // pred_region
          %p204 = scmp.lt.s32.totalorder %s24, 0
          %s205 = scalar_select %p204, %s24, 0
          %s206 = scalar_lea.vmem %s3, %s205
        $region24: #{tpu_custom_call.1} parent=11 // pred_fallthru
          _
      $region12: #{tpu_custom_call.1} parent=5 // pred_fallthru
        _
      %p207 = scmp.lt.s32.totalorder %s13, 2
      // Predicated region
      $region25: #{tpu_custom_call.1} parent=5 // pred_check
        %p208 = pneg %p207
      $region26: #{tpu_custom_call.1} parent=5 // pred_check_branch
        %210 = sbr.rel (%p208) target = $region28
      $region27: #{tpu_custom_call.1} parent=5 // pred_region
        // Predicated region
        $region29: #{tpu_custom_call.1} parent=27 // pred_check
          %p211 = pneg %p54
        $region30: #{tpu_custom_call.1} parent=27 // pred_check_branch
          %213 = sbr.rel (%p211) target = $region32
        $region31: #{tpu_custom_call.1} parent=27 // pred_region
          %s214 = sand.u32 %s44, 1
          %s215 = scalar_lea.sflag [#allocation4], %s214
          %s216 = sand.u32 %s44, 1
          %s217 = smul.addr %s216, 256
          %s218 = scalar_lea.vmem [#allocation3], %s217
          %s219 = smul.u32 32, %s20
          %s220 = smul.u32 2, %s22
          %222 = vsyncadd %s215, 0
          %s223 = smul.addr %s219, 2
          %s224 = sadd.s32 %s220, %s223
          %s225 = smul.addr %s224, 4
          %s226 = scalar_lea.hbm %s0, %s225
          %s227 = sshll.u32 %s226, 4
          %s228 = int_to_ptr.hbm [resolvable:$true] %s227
          %s229 = sshll.u32 %s218, 4
          %s230 = int_to_ptr.vmem [resolvable:$true] %s229
          %235 = dma.hbm_to_vmem [thread:$0]  %s228, 4096, %s230, %s215, 128, 128, 8
        $region32: #{tpu_custom_call.1} parent=27 // pred_fallthru
          _
      $region28: #{tpu_custom_call.1} parent=5 // pred_fallthru
        _
      %p236 = scmp.le.s32.totalorder 1, %s13
      %p237 = scmp.lt.s32.totalorder %s13, 3
      %p238 = pnand %p236, %p237
      %p239 = pneg %p238
      // Predicated region
      $region33: #{tpu_custom_call.1} parent=5 // pred_check
        _
      $region34: #{tpu_custom_call.1} parent=5 // pred_check_branch
        %241 = sbr.rel (%p238) target = $region36
      $region35: #{tpu_custom_call.1} parent=5 // pred_region
        %s242 = ssub.s32 %s13, 1
        %s243 = sand.u32 %s47, 1
        %s244 = scalar_lea.sflag [#allocation4], %s243
        %s245 = sand.u32 %s47, 1
        %s246 = smul.addr %s245, 256
        %s247 = scalar_lea.vmem [#allocation3], %s246
        // Predicated region
        $region37: #{tpu_custom_call.1} parent=35 // pred_check
          %p248 = pneg %p60
        $region38: #{tpu_custom_call.1} parent=35 // pred_check_branch
          %250 = sbr.rel (%p248) target = $region40
        $region39: #{tpu_custom_call.1} parent=35 // pred_region
          %252 = dma.done %s244, 4096
        $region40: #{tpu_custom_call.1} parent=35 // pred_fallthru
          _
        %s253 = sand.u32 %s47, 1
        %s254 = scalar_lea.sflag [#allocation4], %s253
        %s255 = sand.u32 %s47, 1
        %s256 = smul.addr %s255, 256
        %s257 = scalar_lea.vmem [#allocation3], %s256
        %p258 = pneg %p60
        %p259 = pneg %p57
        %s260 = smul.u32 32, %s25
        %p261 = scmp.lt.s32.totalorder %s260, 31
        %s262 = scalar_select %p261, %s260, 31
        %p263 = scmp.lt.s32.totalorder %s24, 0
        %s264 = scalar_select %p263, %s24, 0
        %s265 = sadd.s32 %s264, %s262
        %s266 = smul.addr %s265, 4
        %s267 = scalar_lea.vmem %s1, %s266
        %p268 = pneg %p88
        %p269 = pneg %p85
        %p270 = scmp.lt.s32.totalorder %s24, 0
        %s271 = scalar_select %p270, %s24, 0
        %s272 = scalar_lea.vmem %s2, %s271
        %p273 = pneg %p114
        %p274 = pneg %p111
        %p275 = scmp.lt.s32.totalorder %s24, 0
        %s276 = scalar_select %p275, %s24, 0
        %s277 = scalar_lea.vmem %s3, %s276
        %p278 = pneg %p140
        %p279 = pneg %p137
        %p280 = pneg %p168
        %p281 = pneg %p165
        %s282 = smul.u32 32, %s23
        %p283 = scmp.lt.s32.totalorder %s282, 63
        %s284 = scalar_select %p283, %s282, 63
        %p285 = scmp.lt.s32.totalorder %s24, 0
        %s286 = scalar_select %p285, %s24, 0
        %s287 = sadd.s32 %s286, %s284
        %s288 = smul.addr %s287, 4
        %s289 = scalar_lea.vmem %s4, %s288
        %s290 = smul.u32 32, %s23
        %s291 = smul.u32 2, %s25
        %s292 = smul.u32 32, %s25
        %p293 = scmp.lt.s32.totalorder %s292, 31
        %s294 = scalar_select %p293, %s292, 31
        %p295 = scmp.lt.s32.totalorder %s24, 0
        %s296 = scalar_select %p295, %s24, 0
        %s297 = sadd.s32 %s296, %s294
        %s298 = smul.addr %s297, 4
        %s299 = scalar_lea.vmem %s1, %s298
        %s300 = smul.u32 32, %s25
        %p301 = scmp.lt.s32.totalorder %s24, 0
        %s302 = scalar_select %p301, %s24, 0
        %s303 = scalar_lea.vmem %s2, %s302
        %p304 = scmp.lt.s32.totalorder %s24, 0
        %s305 = scalar_select %p304, %s24, 0
        %s306 = scalar_lea.vmem %s3, %s305
        %s307 = smul.u32 32, %s23
        %p308 = scmp.lt.s32.totalorder %s307, 63
        %s309 = scalar_select %p308, %s307, 63
        %p310 = scmp.lt.s32.totalorder %s24, 0
        %s311 = scalar_select %p310, %s24, 0
        %s312 = sadd.s32 %s311, %s309
        %s313 = smul.addr %s312, 4
        %s314 = scalar_lea.vmem %s4, %s313
        %s315 = smul.u32 32, %s23
        %p316 = scmp.eq.s32.totalorder %s25, 0
        // Predicated region
        $region41: #{tpu_custom_call.1} parent=35 // pred_check
          %p317 = pneg %p316
        $region42: #{tpu_custom_call.1} parent=35 // pred_check_branch
          %319 = sbr.rel (%p317) target = $region44
        $region43: #{tpu_custom_call.1} parent=35 // pred_region
          %vm320 = vcmask 523264
          %321 = vst.msk [vmem:[#allocation2] sm:$0xff] %vm320, 0.0
          %322 = vst.msk [vmem:[#allocation2 + $0x8] sm:$0xff] %vm320, 0.0
          %323 = vst.msk [vmem:[#allocation2 + $0x10] sm:$0xff] %vm320, 0.0
          %324 = vst.msk [vmem:[#allocation2 + $0x18] sm:$0xff] %vm320, 0.0
          %325 = vst.msk [vmem:[#allocation2 + $0x20] sm:$0xff] %vm320, 0.0
          %326 = vst.msk [vmem:[#allocation2 + $0x28] sm:$0xff] %vm320, 0.0
          %327 = vst.msk [vmem:[#allocation2 + $0x30] sm:$0xff] %vm320, 0.0
          %328 = vst.msk [vmem:[#allocation2 + $0x38] sm:$0xff] %vm320, 0.0
          %329 = vst.msk [vmem:[#allocation2 + $0x40] sm:$0xff] %vm320, 0.0
          %330 = vst.msk [vmem:[#allocation2 + $0x48] sm:$0xff] %vm320, 0.0
          %331 = vst.msk [vmem:[#allocation2 + $0x50] sm:$0xff] %vm320, 0.0
          %332 = vst.msk [vmem:[#allocation2 + $0x58] sm:$0xff] %vm320, 0.0
          %333 = vst.msk [vmem:[#allocation2 + $0x60] sm:$0xff] %vm320, 0.0
          %334 = vst.msk [vmem:[#allocation2 + $0x68] sm:$0xff] %vm320, 0.0
          %335 = vst.msk [vmem:[#allocation2 + $0x70] sm:$0xff] %vm320, 0.0
          %336 = vst.msk [vmem:[#allocation2 + $0x78] sm:$0xff] %vm320, 0.0
          %337 = vst.msk [vmem:[#allocation2 + $0x80] sm:$0xff] %vm320, 0.0
          %338 = vst.msk [vmem:[#allocation2 + $0x88] sm:$0xff] %vm320, 0.0
          %339 = vst.msk [vmem:[#allocation2 + $0x90] sm:$0xff] %vm320, 0.0
          %340 = vst.msk [vmem:[#allocation2 + $0x98] sm:$0xff] %vm320, 0.0
          %341 = vst.msk [vmem:[#allocation2 + $0xa0] sm:$0xff] %vm320, 0.0
          %342 = vst.msk [vmem:[#allocation2 + $0xa8] sm:$0xff] %vm320, 0.0
          %343 = vst.msk [vmem:[#allocation2 + $0xb0] sm:$0xff] %vm320, 0.0
          %344 = vst.msk [vmem:[#allocation2 + $0xb8] sm:$0xff] %vm320, 0.0
          %345 = vst.msk [vmem:[#allocation2 + $0xc0] sm:$0xff] %vm320, 0.0
          %346 = vst.msk [vmem:[#allocation2 + $0xc8] sm:$0xff] %vm320, 0.0
          %347 = vst.msk [vmem:[#allocation2 + $0xd0] sm:$0xff] %vm320, 0.0
          %348 = vst.msk [vmem:[#allocation2 + $0xd8] sm:$0xff] %vm320, 0.0
          %349 = vst.msk [vmem:[#allocation2 + $0xe0] sm:$0xff] %vm320, 0.0
          %350 = vst.msk [vmem:[#allocation2 + $0xe8] sm:$0xff] %vm320, 0.0
          %351 = vst.msk [vmem:[#allocation2 + $0xf0] sm:$0xff] %vm320, 0.0
          %352 = vst.msk [vmem:[#allocation2 + $0xf8] sm:$0xff] %vm320, 0.0
        $region44: #{tpu_custom_call.1} parent=35 // pred_fallthru
          _
        %v353 = vld [vmem:[#allocation2] sm:$0xff]
        %v354 = vld [vmem:[#allocation2 + $0x8] sm:$0xff]
        %v355 = vld [vmem:[#allocation2 + $0x10] sm:$0xff]
        %v356 = vld [vmem:[#allocation2 + $0x18] sm:$0xff]
        %v357 = vld [vmem:[#allocation2 + $0x20] sm:$0xff]
        %v358 = vld [vmem:[#allocation2 + $0x28] sm:$0xff]
        %v359 = vld [vmem:[#allocation2 + $0x30] sm:$0xff]
        %v360 = vld [vmem:[#allocation2 + $0x38] sm:$0xff]
        %v361 = vld [vmem:[#allocation2 + $0x40] sm:$0xff]
        %v362 = vld [vmem:[#allocation2 + $0x48] sm:$0xff]
        %v363 = vld [vmem:[#allocation2 + $0x50] sm:$0xff]
        %v364 = vld [vmem:[#allocation2 + $0x58] sm:$0xff]
        %v365 = vld [vmem:[#allocation2 + $0x60] sm:$0xff]
        %v366 = vld [vmem:[#allocation2 + $0x68] sm:$0xff]
        %v367 = vld [vmem:[#allocation2 + $0x70] sm:$0xff]
        %v368 = vld [vmem:[#allocation2 + $0x78] sm:$0xff]
        %v369 = vld [vmem:[#allocation2 + $0x80] sm:$0xff]
        %v370 = vld [vmem:[#allocation2 + $0x88] sm:$0xff]
        %v371 = vld [vmem:[#allocation2 + $0x90] sm:$0xff]
        %v372 = vld [vmem:[#allocation2 + $0x98] sm:$0xff]
        %v373 = vld [vmem:[#allocation2 + $0xa0] sm:$0xff]
        %v374 = vld [vmem:[#allocation2 + $0xa8] sm:$0xff]
        %v375 = vld [vmem:[#allocation2 + $0xb0] sm:$0xff]
        %v376 = vld [vmem:[#allocation2 + $0xb8] sm:$0xff]
        %v377 = vld [vmem:[#allocation2 + $0xc0] sm:$0xff]
        %v378 = vld [vmem:[#allocation2 + $0xc8] sm:$0xff]
        %v379 = vld [vmem:[#allocation2 + $0xd0] sm:$0xff]
        %v380 = vld [vmem:[#allocation2 + $0xd8] sm:$0xff]
        %v381 = vld [vmem:[#allocation2 + $0xe0] sm:$0xff]
        %v382 = vld [vmem:[#allocation2 + $0xe8] sm:$0xff]
        %v383 = vld [vmem:[#allocation2 + $0xf0] sm:$0xff]
        %v384 = vld [vmem:[#allocation2 + $0xf8] sm:$0xff]
        %v385 = vld [vmem:[%s247] sm:$0xff]
        %v386 = vld [vmem:[%s247 + $0x8] sm:$0xff]
        %v387 = vld [vmem:[%s247 + $0x10] sm:$0xff]
        %v388 = vld [vmem:[%s247 + $0x18] sm:$0xff]
        %v389 = vld [vmem:[%s247 + $0x20] sm:$0xff]
        %v390 = vld [vmem:[%s247 + $0x28] sm:$0xff]
        %v391 = vld [vmem:[%s247 + $0x30] sm:$0xff]
        %v392 = vld [vmem:[%s247 + $0x38] sm:$0xff]
        %v393 = vld [vmem:[%s247 + $0x40] sm:$0xff]
        %v394 = vld [vmem:[%s247 + $0x48] sm:$0xff]
        %v395 = vld [vmem:[%s247 + $0x50] sm:$0xff]
        %v396 = vld [vmem:[%s247 + $0x58] sm:$0xff]
        %v397 = vld [vmem:[%s247 + $0x60] sm:$0xff]
        %v398 = vld [vmem:[%s247 + $0x68] sm:$0xff]
        %v399 = vld [vmem:[%s247 + $0x70] sm:$0xff]
        %v400 = vld [vmem:[%s247 + $0x78] sm:$0xff]
        %v401 = vld [vmem:[%s247 + $0x80] sm:$0xff]
        %v402 = vld [vmem:[%s247 + $0x88] sm:$0xff]
        %v403 = vld [vmem:[%s247 + $0x90] sm:$0xff]
        %v404 = vld [vmem:[%s247 + $0x98] sm:$0xff]
        %v405 = vld [vmem:[%s247 + $0xa0] sm:$0xff]
        %v406 = vld [vmem:[%s247 + $0xa8] sm:$0xff]
        %v407 = vld [vmem:[%s247 + $0xb0] sm:$0xff]
        %v408 = vld [vmem:[%s247 + $0xb8] sm:$0xff]
        %v409 = vld [vmem:[%s247 + $0xc0] sm:$0xff]
        %v410 = vld [vmem:[%s247 + $0xc8] sm:$0xff]
        %v411 = vld [vmem:[%s247 + $0xd0] sm:$0xff]
        %v412 = vld [vmem:[%s247 + $0xd8] sm:$0xff]
        %v413 = vld [vmem:[%s247 + $0xe0] sm:$0xff]
        %v414 = vld [vmem:[%s247 + $0xe8] sm:$0xff]
        %v415 = vld [vmem:[%s247 + $0xf0] sm:$0xff]
        %v416 = vld [vmem:[%s247 + $0xf8] sm:$0xff]
        %v417 = vld [vmem:[%s299] sm:$0xf]
        %v418 = vld [vmem:[%s299 + $0x4] sm:$0xf]
        %v419 = vld [vmem:[%s299 + $0x8] sm:$0xf]
        %v420 = vld [vmem:[%s299 + $0xc] sm:$0xf]
        %v421 = vld [vmem:[%s299 + $0x10] sm:$0xf]
        %v422 = vld [vmem:[%s299 + $0x14] sm:$0xf]
        %v423 = vld [vmem:[%s299 + $0x18] sm:$0xf]
        %v424 = vld [vmem:[%s299 + $0x1c] sm:$0xf]
        %v425 = vld [vmem:[%s299 + $0x20] sm:$0xf]
        %v426 = vld [vmem:[%s299 + $0x24] sm:$0xf]
        %v427 = vld [vmem:[%s299 + $0x28] sm:$0xf]
        %v428 = vld [vmem:[%s299 + $0x2c] sm:$0xf]
        %v429 = vld [vmem:[%s299 + $0x30] sm:$0xf]
        %v430 = vld [vmem:[%s299 + $0x34] sm:$0xf]
        %v431 = vld [vmem:[%s299 + $0x38] sm:$0xf]
        %v432 = vld [vmem:[%s299 + $0x3c] sm:$0xf]
        %v433 = vld [vmem:[%s299 + $0x40] sm:$0xf]
        %v434 = vld [vmem:[%s299 + $0x44] sm:$0xf]
        %v435 = vld [vmem:[%s299 + $0x48] sm:$0xf]
        %v436 = vld [vmem:[%s299 + $0x4c] sm:$0xf]
        %v437 = vld [vmem:[%s299 + $0x50] sm:$0xf]
        %v438 = vld [vmem:[%s299 + $0x54] sm:$0xf]
        %v439 = vld [vmem:[%s299 + $0x58] sm:$0xf]
        %v440 = vld [vmem:[%s299 + $0x5c] sm:$0xf]
        %v441 = vld [vmem:[%s299 + $0x60] sm:$0xf]
        %v442 = vld [vmem:[%s299 + $0x64] sm:$0xf]
        %v443 = vld [vmem:[%s299 + $0x68] sm:$0xf]
        %v444 = vld [vmem:[%s299 + $0x6c] sm:$0xf]
        %v445 = vld [vmem:[%s299 + $0x70] sm:$0xf]
        %v446 = vld [vmem:[%s299 + $0x74] sm:$0xf]
        %v447 = vld [vmem:[%s299 + $0x78] sm:$0xf]
        %v448 = vld [vmem:[%s299 + $0x7c] sm:$0xf]
        %v481 = vunpack.c.l.b16 %v385
        %v482 = vunpack.c.h.b16 %v385
        %v483 = vunpack.c.l.b16 %v386
        %v484 = vunpack.c.h.b16 %v386
        %v485 = vunpack.c.l.b16 %v387
        %v486 = vunpack.c.h.b16 %v387
        %v487 = vunpack.c.l.b16 %v388
        %v488 = vunpack.c.h.b16 %v388
        %v489 = vunpack.c.l.b16 %v389
        %v490 = vunpack.c.h.b16 %v389
        %v491 = vunpack.c.l.b16 %v390
        %v492 = vunpack.c.h.b16 %v390
        %v493 = vunpack.c.l.b16 %v391
        %v494 = vunpack.c.h.b16 %v391
        %v495 = vunpack.c.l.b16 %v392
        %v496 = vunpack.c.h.b16 %v392
        %v497 = vunpack.c.l.b16 %v393
        %v498 = vunpack.c.h.b16 %v393
        %v499 = vunpack.c.l.b16 %v394
        %v500 = vunpack.c.h.b16 %v394
        %v501 = vunpack.c.l.b16 %v395
        %v502 = vunpack.c.h.b16 %v395
        %v503 = vunpack.c.l.b16 %v396
        %v504 = vunpack.c.h.b16 %v396
        %v505 = vunpack.c.l.b16 %v397
        %v506 = vunpack.c.h.b16 %v397
        %v507 = vunpack.c.l.b16 %v398
        %v508 = vunpack.c.h.b16 %v398
        %v509 = vunpack.c.l.b16 %v399
        %v510 = vunpack.c.h.b16 %v399
        %v511 = vunpack.c.l.b16 %v400
        %v512 = vunpack.c.h.b16 %v400
        %v513 = vunpack.c.l.b16 %v401
        %v514 = vunpack.c.h.b16 %v401
        %v515 = vunpack.c.l.b16 %v402
        %v516 = vunpack.c.h.b16 %v402
        %v517 = vunpack.c.l.b16 %v403
        %v518 = vunpack.c.h.b16 %v403
        %v519 = vunpack.c.l.b16 %v404
        %v520 = vunpack.c.h.b16 %v404
        %v521 = vunpack.c.l.b16 %v405
        %v522 = vunpack.c.h.b16 %v405
        %v523 = vunpack.c.l.b16 %v406
        %v524 = vunpack.c.h.b16 %v406
        %v525 = vunpack.c.l.b16 %v407
        %v526 = vunpack.c.h.b16 %v407
        %v527 = vunpack.c.l.b16 %v408
        %v528 = vunpack.c.h.b16 %v408
        %v529 = vunpack.c.l.b16 %v409
        %v530 = vunpack.c.h.b16 %v409
        %v531 = vunpack.c.l.b16 %v410
        %v532 = vunpack.c.h.b16 %v410
        %v533 = vunpack.c.l.b16 %v411
        %v534 = vunpack.c.h.b16 %v411
        %v535 = vunpack.c.l.b16 %v412
        %v536 = vunpack.c.h.b16 %v412
        %v537 = vunpack.c.l.b16 %v413
        %v538 = vunpack.c.h.b16 %v413
        %v539 = vunpack.c.l.b16 %v414
        %v540 = vunpack.c.h.b16 %v414
        %v541 = vunpack.c.l.b16 %v415
        %v542 = vunpack.c.h.b16 %v415
        %v543 = vunpack.c.l.b16 %v416
        %v544 = vunpack.c.h.b16 %v416
        %v545 = vpack.c.b16 %v483, %v481
        %v546 = vpack.c.b16 %v484, %v482
        %v547 = vpack.c.b16 %v487, %v485
        %v548 = vpack.c.b16 %v488, %v486
        %v549 = vpack.c.b16 %v491, %v489
        %v550 = vpack.c.b16 %v492, %v490
        %v551 = vpack.c.b16 %v495, %v493
        %v552 = vpack.c.b16 %v496, %v494
        %v553 = vpack.c.b16 %v499, %v497
        %v554 = vpack.c.b16 %v500, %v498
        %v555 = vpack.c.b16 %v503, %v501
        %v556 = vpack.c.b16 %v504, %v502
        %v557 = vpack.c.b16 %v507, %v505
        %v558 = vpack.c.b16 %v508, %v506
        %v559 = vpack.c.b16 %v511, %v509
        %v560 = vpack.c.b16 %v512, %v510
        %v561 = vpack.c.b16 %v515, %v513
        %v562 = vpack.c.b16 %v516, %v514
        %v563 = vpack.c.b16 %v519, %v517
        %v564 = vpack.c.b16 %v520, %v518
        %v565 = vpack.c.b16 %v523, %v521
        %v566 = vpack.c.b16 %v524, %v522
        %v567 = vpack.c.b16 %v527, %v525
        %v568 = vpack.c.b16 %v528, %v526
        %v569 = vpack.c.b16 %v531, %v529
        %v570 = vpack.c.b16 %v532, %v530
        %v571 = vpack.c.b16 %v535, %v533
        %v572 = vpack.c.b16 %v536, %v534
        %v573 = vpack.c.b16 %v539, %v537
        %v574 = vpack.c.b16 %v540, %v538
        %v575 = vpack.c.b16 %v543, %v541
        %v576 = vpack.c.b16 %v544, %v542
        %v641 = vunpack.c.l.b16 %v417
        %v642 = vunpack.c.l.b16 %v418
        %v643 = vunpack.c.l.b16 %v419
        %v644 = vunpack.c.l.b16 %v420
        %v645 = vunpack.c.l.b16 %v421
        %v646 = vunpack.c.l.b16 %v422
        %v647 = vunpack.c.l.b16 %v423
        %v648 = vunpack.c.l.b16 %v424
        %v649 = vunpack.c.l.b16 %v425
        %v650 = vunpack.c.l.b16 %v426
        %v651 = vunpack.c.l.b16 %v427
        %v652 = vunpack.c.l.b16 %v428
        %v653 = vunpack.c.l.b16 %v429
        %v654 = vunpack.c.l.b16 %v430
        %v655 = vunpack.c.l.b16 %v431
        %v656 = vunpack.c.l.b16 %v432
        %v657 = vunpack.c.l.b16 %v433
        %v658 = vunpack.c.l.b16 %v434
        %v659 = vunpack.c.l.b16 %v435
        %v660 = vunpack.c.l.b16 %v436
        %v661 = vunpack.c.l.b16 %v437
        %v662 = vunpack.c.l.b16 %v438
        %v663 = vunpack.c.l.b16 %v439
        %v664 = vunpack.c.l.b16 %v440
        %v665 = vunpack.c.l.b16 %v441
        %v666 = vunpack.c.l.b16 %v442
        %v667 = vunpack.c.l.b16 %v443
        %v668 = vunpack.c.l.b16 %v444
        %v669 = vunpack.c.l.b16 %v445
        %v670 = vunpack.c.l.b16 %v446
        %v671 = vunpack.c.l.b16 %v447
        %v672 = vunpack.c.l.b16 %v448
        %v673 = vpack.c.b16 %v642, %v641
        %v674 = vpack.c.b16 %v644, %v643
        %v675 = vpack.c.b16 %v646, %v645
        %v676 = vpack.c.b16 %v648, %v647
        %v677 = vpack.c.b16 %v650, %v649
        %v678 = vpack.c.b16 %v652, %v651
        %v679 = vpack.c.b16 %v654, %v653
        %v680 = vpack.c.b16 %v656, %v655
        %v681 = vpack.c.b16 %v658, %v657
        %v682 = vpack.c.b16 %v660, %v659
        %v683 = vpack.c.b16 %v662, %v661
        %v684 = vpack.c.b16 %v664, %v663
        %v685 = vpack.c.b16 %v666, %v665
        %v686 = vpack.c.b16 %v668, %v667
        %v687 = vpack.c.b16 %v670, %v669
        %v688 = vpack.c.b16 %v672, %v671
        %705 = vmatpush.bf16.msra.mxu0 %v680
        %706 = vmatpush.bf16.msra.mxu0 %v679
        %707 = vmatpush.bf16.msra.mxu0 %v678
        %708 = vmatpush.bf16.msra.mxu0 %v677
        %709 = vmatpush.bf16.msra.mxu0 %v676
        %710 = vmatpush.bf16.msra.mxu0 %v675
        %711 = vmatpush.bf16.msra.mxu0 %v674
        %712 = vmatpush.bf16.msra.mxu0 %v673
        %713 = vmatmul.bf16.gmra.mxu0 %v545
        %v714 = vpop.f32.mrf.mxu0
        %v715 = vadd.f32 0.0, %v714
        %v716 = vpop.f32.mrf.mxu0
        %v717 = vadd.f32 0.0, %v716
        %718 = vmatmul.bf16.gmra.mxu0 %v547
        %v719 = vpop.f32.mrf.mxu0
        %v720 = vadd.f32 0.0, %v719
        %v721 = vpop.f32.mrf.mxu0
        %v722 = vadd.f32 0.0, %v721
        %723 = vmatmul.bf16.gmra.mxu0 %v549
        %v724 = vpop.f32.mrf.mxu0
        %v725 = vadd.f32 0.0, %v724
        %v726 = vpop.f32.mrf.mxu0
        %v727 = vadd.f32 0.0, %v726
        %728 = vmatmul.bf16.gmra.mxu0 %v551
        %v729 = vpop.f32.mrf.mxu0
        %v730 = vadd.f32 0.0, %v729
        %v731 = vpop.f32.mrf.mxu0
        %v732 = vadd.f32 0.0, %v731
        %733 = vmatmul.bf16.gmra.mxu0 %v553
        %v734 = vpop.f32.mrf.mxu0
        %v735 = vadd.f32 0.0, %v734
        %v736 = vpop.f32.mrf.mxu0
        %v737 = vadd.f32 0.0, %v736
        %738 = vmatmul.bf16.gmra.mxu0 %v555
        %v739 = vpop.f32.mrf.mxu0
        %v740 = vadd.f32 0.0, %v739
        %v741 = vpop.f32.mrf.mxu0
        %v742 = vadd.f32 0.0, %v741
        %743 = vmatmul.bf16.gmra.mxu0 %v557
        %v744 = vpop.f32.mrf.mxu0
        %v745 = vadd.f32 0.0, %v744
        %v746 = vpop.f32.mrf.mxu0
        %v747 = vadd.f32 0.0, %v746
        %748 = vmatmul.bf16.gmra.mxu0 %v559
        %v749 = vpop.f32.mrf.mxu0
        %v750 = vadd.f32 0.0, %v749
        %v751 = vpop.f32.mrf.mxu0
        %v752 = vadd.f32 0.0, %v751
        %753 = vmatmul.bf16.gmra.mxu0 %v561
        %v754 = vpop.f32.mrf.mxu0
        %v755 = vadd.f32 0.0, %v754
        %v756 = vpop.f32.mrf.mxu0
        %v757 = vadd.f32 0.0, %v756
        %758 = vmatmul.bf16.gmra.mxu0 %v563
        %v759 = vpop.f32.mrf.mxu0
        %v760 = vadd.f32 0.0, %v759
        %v761 = vpop.f32.mrf.mxu0
        %v762 = vadd.f32 0.0, %v761
        %763 = vmatmul.bf16.gmra.mxu0 %v565
        %v764 = vpop.f32.mrf.mxu0
        %v765 = vadd.f32 0.0, %v764
        %v766 = vpop.f32.mrf.mxu0
        %v767 = vadd.f32 0.0, %v766
        %768 = vmatmul.bf16.gmra.mxu0 %v567
        %v769 = vpop.f32.mrf.mxu0
        %v770 = vadd.f32 0.0, %v769
        %v771 = vpop.f32.mrf.mxu0
        %v772 = vadd.f32 0.0, %v771
        %773 = vmatmul.bf16.gmra.mxu0 %v569
        %v774 = vpop.f32.mrf.mxu0
        %v775 = vadd.f32 0.0, %v774
        %v776 = vpop.f32.mrf.mxu0
        %v777 = vadd.f32 0.0, %v776
        %778 = vmatmul.bf16.gmra.mxu0 %v571
        %v779 = vpop.f32.mrf.mxu0
        %v780 = vadd.f32 0.0, %v779
        %v781 = vpop.f32.mrf.mxu0
        %v782 = vadd.f32 0.0, %v781
        %783 = vmatmul.bf16.gmra.mxu0 %v573
        %v784 = vpop.f32.mrf.mxu0
        %v785 = vadd.f32 0.0, %v784
        %v786 = vpop.f32.mrf.mxu0
        %v787 = vadd.f32 0.0, %v786
        %788 = vmatmul.bf16.gmra.mxu0 %v575
        %v789 = vpop.f32.mrf.mxu0
        %v790 = vadd.f32 0.0, %v789
        %v791 = vpop.f32.mrf.mxu0
        %v792 = vadd.f32 0.0, %v791
        %793 = vdwg.mxu0
        %794 = vmatpush.bf16.msra.mxu0 %v688
        %795 = vmatpush.bf16.msra.mxu0 %v687
        %796 = vmatpush.bf16.msra.mxu0 %v686
        %797 = vmatpush.bf16.msra.mxu0 %v685
        %798 = vmatpush.bf16.msra.mxu0 %v684
        %799 = vmatpush.bf16.msra.mxu0 %v683
        %800 = vmatpush.bf16.msra.mxu0 %v682
        %801 = vmatpush.bf16.msra.mxu0 %v681
        %802 = vmatmul.bf16.gmra.mxu0 %v546
        %v803 = vpop.f32.mrf.mxu0
        %v804 = vadd.f32 %v715, %v803
        %v805 = vpop.f32.mrf.mxu0
        %v806 = vadd.f32 %v717, %v805
        %807 = vmatmul.bf16.gmra.mxu0 %v548
        %v808 = vpop.f32.mrf.mxu0
        %v809 = vadd.f32 %v720, %v808
        %v810 = vpop.f32.mrf.mxu0
        %v811 = vadd.f32 %v722, %v810
        %812 = vmatmul.bf16.gmra.mxu0 %v550
        %v813 = vpop.f32.mrf.mxu0
        %v814 = vadd.f32 %v725, %v813
        %v815 = vpop.f32.mrf.mxu0
        %v816 = vadd.f32 %v727, %v815
        %817 = vmatmul.bf16.gmra.mxu0 %v552
        %v818 = vpop.f32.mrf.mxu0
        %v819 = vadd.f32 %v730, %v818
        %v820 = vpop.f32.mrf.mxu0
        %v821 = vadd.f32 %v732, %v820
        %822 = vmatmul.bf16.gmra.mxu0 %v554
        %v823 = vpop.f32.mrf.mxu0
        %v824 = vadd.f32 %v735, %v823
        %v825 = vpop.f32.mrf.mxu0
        %v826 = vadd.f32 %v737, %v825
        %827 = vmatmul.bf16.gmra.mxu0 %v556
        %v828 = vpop.f32.mrf.mxu0
        %v829 = vadd.f32 %v740, %v828
        %v830 = vpop.f32.mrf.mxu0
        %v831 = vadd.f32 %v742, %v830
        %832 = vmatmul.bf16.gmra.mxu0 %v558
        %v833 = vpop.f32.mrf.mxu0
        %v834 = vadd.f32 %v745, %v833
        %v835 = vpop.f32.mrf.mxu0
        %v836 = vadd.f32 %v747, %v835
        %837 = vmatmul.bf16.gmra.mxu0 %v560
        %v838 = vpop.f32.mrf.mxu0
        %v839 = vadd.f32 %v750, %v838
        %v840 = vpop.f32.mrf.mxu0
        %v841 = vadd.f32 %v752, %v840
        %842 = vmatmul.bf16.gmra.mxu0 %v562
        %v843 = vpop.f32.mrf.mxu0
        %v844 = vadd.f32 %v755, %v843
        %v845 = vpop.f32.mrf.mxu0
        %v846 = vadd.f32 %v757, %v845
        %847 = vmatmul.bf16.gmra.mxu0 %v564
        %v848 = vpop.f32.mrf.mxu0
        %v849 = vadd.f32 %v760, %v848
        %v850 = vpop.f32.mrf.mxu0
        %v851 = vadd.f32 %v762, %v850
        %852 = vmatmul.bf16.gmra.mxu0 %v566
        %v853 = vpop.f32.mrf.mxu0
        %v854 = vadd.f32 %v765, %v853
        %v855 = vpop.f32.mrf.mxu0
        %v856 = vadd.f32 %v767, %v855
        %857 = vmatmul.bf16.gmra.mxu0 %v568
        %v858 = vpop.f32.mrf.mxu0
        %v859 = vadd.f32 %v770, %v858
        %v860 = vpop.f32.mrf.mxu0
        %v861 = vadd.f32 %v772, %v860
        %862 = vmatmul.bf16.gmra.mxu0 %v570
        %v863 = vpop.f32.mrf.mxu0
        %v864 = vadd.f32 %v775, %v863
        %v865 = vpop.f32.mrf.mxu0
        %v866 = vadd.f32 %v777, %v865
        %867 = vmatmul.bf16.gmra.mxu0 %v572
        %v868 = vpop.f32.mrf.mxu0
        %v869 = vadd.f32 %v780, %v868
        %v870 = vpop.f32.mrf.mxu0
        %v871 = vadd.f32 %v782, %v870
        %872 = vmatmul.bf16.gmra.mxu0 %v574
        %v873 = vpop.f32.mrf.mxu0
        %v874 = vadd.f32 %v785, %v873
        %v875 = vpop.f32.mrf.mxu0
        %v876 = vadd.f32 %v787, %v875
        %877 = vmatmul.bf16.gmra.mxu0 %v576
        %v878 = vpop.f32.mrf.mxu0
        %v879 = vadd.f32 %v790, %v878
        %v880 = vpop.f32.mrf.mxu0
        %v881 = vadd.f32 %v792, %v880
        %882 = vdwg.mxu0
        %v883 = vadd.f32 %v353, %v804
        %v884 = vadd.f32 %v354, %v806
        %v885 = vadd.f32 %v355, %v809
        %v886 = vadd.f32 %v356, %v811
        %v887 = vadd.f32 %v357, %v814
        %v888 = vadd.f32 %v358, %v816
        %v889 = vadd.f32 %v359, %v819
        %v890 = vadd.f32 %v360, %v821
        %v891 = vadd.f32 %v361, %v824
        %v892 = vadd.f32 %v362, %v826
        %v893 = vadd.f32 %v363, %v829
        %v894 = vadd.f32 %v364, %v831
        %v895 = vadd.f32 %v365, %v834
        %v896 = vadd.f32 %v366, %v836
        %v897 = vadd.f32 %v367, %v839
        %v898 = vadd.f32 %v368, %v841
        %v899 = vadd.f32 %v369, %v844
        %v900 = vadd.f32 %v370, %v846
        %v901 = vadd.f32 %v371, %v849
        %v902 = vadd.f32 %v372, %v851
        %v903 = vadd.f32 %v373, %v854
        %v904 = vadd.f32 %v374, %v856
        %v905 = vadd.f32 %v375, %v859
        %v906 = vadd.f32 %v376, %v861
        %v907 = vadd.f32 %v377, %v864
        %v908 = vadd.f32 %v378, %v866
        %v909 = vadd.f32 %v379, %v869
        %v910 = vadd.f32 %v380, %v871
        %v911 = vadd.f32 %v381, %v874
        %v912 = vadd.f32 %v382, %v876
        %v913 = vadd.f32 %v383, %v879
        %v914 = vadd.f32 %v384, %v881
        %vm915 = vcmask 523264
        %916 = vst.msk [vmem:[#allocation2] sm:$0xff] %vm915, %v883
        %917 = vst.msk [vmem:[#allocation2 + $0x8] sm:$0xff] %vm915, %v884
        %918 = vst.msk [vmem:[#allocation2 + $0x10] sm:$0xff] %vm915, %v885
        %919 = vst.msk [vmem:[#allocation2 + $0x18] sm:$0xff] %vm915, %v886
        %920 = vst.msk [vmem:[#allocation2 + $0x20] sm:$0xff] %vm915, %v887
        %921 = vst.msk [vmem:[#allocation2 + $0x28] sm:$0xff] %vm915, %v888
        %922 = vst.msk [vmem:[#allocation2 + $0x30] sm:$0xff] %vm915, %v889
        %923 = vst.msk [vmem:[#allocation2 + $0x38] sm:$0xff] %vm915, %v890
        %924 = vst.msk [vmem:[#allocation2 + $0x40] sm:$0xff] %vm915, %v891
        %925 = vst.msk [vmem:[#allocation2 + $0x48] sm:$0xff] %vm915, %v892
        %926 = vst.msk [vmem:[#allocation2 + $0x50] sm:$0xff] %vm915, %v893
        %927 = vst.msk [vmem:[#allocation2 + $0x58] sm:$0xff] %vm915, %v894
        %928 = vst.msk [vmem:[#allocation2 + $0x60] sm:$0xff] %vm915, %v895
        %929 = vst.msk [vmem:[#allocation2 + $0x68] sm:$0xff] %vm915, %v896
        %930 = vst.msk [vmem:[#allocation2 + $0x70] sm:$0xff] %vm915, %v897
        %931 = vst.msk [vmem:[#allocation2 + $0x78] sm:$0xff] %vm915, %v898
        %932 = vst.msk [vmem:[#allocation2 + $0x80] sm:$0xff] %vm915, %v899
        %933 = vst.msk [vmem:[#allocation2 + $0x88] sm:$0xff] %vm915, %v900
        %934 = vst.msk [vmem:[#allocation2 + $0x90] sm:$0xff] %vm915, %v901
        %935 = vst.msk [vmem:[#allocation2 + $0x98] sm:$0xff] %vm915, %v902
        %936 = vst.msk [vmem:[#allocation2 + $0xa0] sm:$0xff] %vm915, %v903
        %937 = vst.msk [vmem:[#allocation2 + $0xa8] sm:$0xff] %vm915, %v904
        %938 = vst.msk [vmem:[#allocation2 + $0xb0] sm:$0xff] %vm915, %v905
        %939 = vst.msk [vmem:[#allocation2 + $0xb8] sm:$0xff] %vm915, %v906
        %940 = vst.msk [vmem:[#allocation2 + $0xc0] sm:$0xff] %vm915, %v907
        %941 = vst.msk [vmem:[#allocation2 + $0xc8] sm:$0xff] %vm915, %v908
        %942 = vst.msk [vmem:[#allocation2 + $0xd0] sm:$0xff] %vm915, %v909
        %943 = vst.msk [vmem:[#allocation2 + $0xd8] sm:$0xff] %vm915, %v910
        %944 = vst.msk [vmem:[#allocation2 + $0xe0] sm:$0xff] %vm915, %v911
        %945 = vst.msk [vmem:[#allocation2 + $0xe8] sm:$0xff] %vm915, %v912
        %946 = vst.msk [vmem:[#allocation2 + $0xf0] sm:$0xff] %vm915, %v913
        %947 = vst.msk [vmem:[#allocation2 + $0xf8] sm:$0xff] %vm915, %v914
        // Predicated region
        $region45: #{tpu_custom_call.1} parent=35 // pred_check
          %p948 = pneg %p316
        $region46: #{tpu_custom_call.1} parent=35 // pred_check_branch
          %950 = sbr.rel (%p948) target = $region48
        $region47: #{tpu_custom_call.1} parent=35 // pred_region
          %v951 = vld [vmem:[#allocation2] sm:$0xff]
          %v952 = vld [vmem:[#allocation2 + $0x8] sm:$0xff]
          %v953 = vld [vmem:[#allocation2 + $0x10] sm:$0xff]
          %v954 = vld [vmem:[#allocation2 + $0x18] sm:$0xff]
          %v955 = vld [vmem:[#allocation2 + $0x20] sm:$0xff]
          %v956 = vld [vmem:[#allocation2 + $0x28] sm:$0xff]
          %v957 = vld [vmem:[#allocation2 + $0x30] sm:$0xff]
          %v958 = vld [vmem:[#allocation2 + $0x38] sm:$0xff]
          %v959 = vld [vmem:[#allocation2 + $0x40] sm:$0xff]
          %v960 = vld [vmem:[#allocation2 + $0x48] sm:$0xff]
          %v961 = vld [vmem:[#allocation2 + $0x50] sm:$0xff]
          %v962 = vld [vmem:[#allocation2 + $0x58] sm:$0xff]
          %v963 = vld [vmem:[#allocation2 + $0x60] sm:$0xff]
          %v964 = vld [vmem:[#allocation2 + $0x68] sm:$0xff]
          %v965 = vld [vmem:[#allocation2 + $0x70] sm:$0xff]
          %v966 = vld [vmem:[#allocation2 + $0x78] sm:$0xff]
          %v967 = vld [vmem:[#allocation2 + $0x80] sm:$0xff]
          %v968 = vld [vmem:[#allocation2 + $0x88] sm:$0xff]
          %v969 = vld [vmem:[#allocation2 + $0x90] sm:$0xff]
          %v970 = vld [vmem:[#allocation2 + $0x98] sm:$0xff]
          %v971 = vld [vmem:[#allocation2 + $0xa0] sm:$0xff]
          %v972 = vld [vmem:[#allocation2 + $0xa8] sm:$0xff]
          %v973 = vld [vmem:[#allocation2 + $0xb0] sm:$0xff]
          %v974 = vld [vmem:[#allocation2 + $0xb8] sm:$0xff]
          %v975 = vld [vmem:[#allocation2 + $0xc0] sm:$0xff]
          %v976 = vld [vmem:[#allocation2 + $0xc8] sm:$0xff]
          %v977 = vld [vmem:[#allocation2 + $0xd0] sm:$0xff]
          %v978 = vld [vmem:[#allocation2 + $0xd8] sm:$0xff]
          %v979 = vld [vmem:[#allocation2 + $0xe0] sm:$0xff]
          %v980 = vld [vmem:[#allocation2 + $0xe8] sm:$0xff]
          %v981 = vld [vmem:[#allocation2 + $0xf0] sm:$0xff]
          %v982 = vld [vmem:[#allocation2 + $0xf8] sm:$0xff]
          %v983 = vld [vmem:[%s303] sm:$0x1]
          %v985 = vperm.slane %v983, 0
          %v987 = vmul.f32 %v951, %v985
          %v988 = vmul.f32 %v952, %v985
          %v989 = vmul.f32 %v953, %v985
          %v990 = vmul.f32 %v954, %v985
          %v991 = vmul.f32 %v955, %v985
          %v992 = vmul.f32 %v956, %v985
          %v993 = vmul.f32 %v957, %v985
          %v994 = vmul.f32 %v958, %v985
          %v995 = vmul.f32 %v959, %v985
          %v996 = vmul.f32 %v960, %v985
          %v997 = vmul.f32 %v961, %v985
          %v998 = vmul.f32 %v962, %v985
          %v999 = vmul.f32 %v963, %v985
          %v1000 = vmul.f32 %v964, %v985
          %v1001 = vmul.f32 %v965, %v985
          %v1002 = vmul.f32 %v966, %v985
          %v1003 = vmul.f32 %v967, %v985
          %v1004 = vmul.f32 %v968, %v985
          %v1005 = vmul.f32 %v969, %v985
          %v1006 = vmul.f32 %v970, %v985
          %v1007 = vmul.f32 %v971, %v985
          %v1008 = vmul.f32 %v972, %v985
          %v1009 = vmul.f32 %v973, %v985
          %v1010 = vmul.f32 %v974, %v985
          %v1011 = vmul.f32 %v975, %v985
          %v1012 = vmul.f32 %v976, %v985
          %v1013 = vmul.f32 %v977, %v985
          %v1014 = vmul.f32 %v978, %v985
          %v1015 = vmul.f32 %v979, %v985
          %v1016 = vmul.f32 %v980, %v985
          %v1017 = vmul.f32 %v981, %v985
          %v1018 = vmul.f32 %v982, %v985
          %v1019 = vld [vmem:[%s306] sm:$0x1]
          %v1021 = vperm.slane %v1019, 0
          %v1023 = vadd.f32 %v987, %v1021
          %v1024 = vadd.f32 %v988, %v1021
          %v1025 = vadd.f32 %v989, %v1021
          %v1026 = vadd.f32 %v990, %v1021
          %v1027 = vadd.f32 %v991, %v1021
          %v1028 = vadd.f32 %v992, %v1021
          %v1029 = vadd.f32 %v993, %v1021
          %v1030 = vadd.f32 %v994, %v1021
          %v1031 = vadd.f32 %v995, %v1021
          %v1032 = vadd.f32 %v996, %v1021
          %v1033 = vadd.f32 %v997, %v1021
          %v1034 = vadd.f32 %v998, %v1021
          %v1035 = vadd.f32 %v999, %v1021
          %v1036 = vadd.f32 %v1000, %v1021
          %v1037 = vadd.f32 %v1001, %v1021
          %v1038 = vadd.f32 %v1002, %v1021
          %v1039 = vadd.f32 %v1003, %v1021
          %v1040 = vadd.f32 %v1004, %v1021
          %v1041 = vadd.f32 %v1005, %v1021
          %v1042 = vadd.f32 %v1006, %v1021
          %v1043 = vadd.f32 %v1007, %v1021
          %v1044 = vadd.f32 %v1008, %v1021
          %v1045 = vadd.f32 %v1009, %v1021
          %v1046 = vadd.f32 %v1010, %v1021
          %v1047 = vadd.f32 %v1011, %v1021
          %v1048 = vadd.f32 %v1012, %v1021
          %v1049 = vadd.f32 %v1013, %v1021
          %v1050 = vadd.f32 %v1014, %v1021
          %v1051 = vadd.f32 %v1015, %v1021
          %v1052 = vadd.f32 %v1016, %v1021
          %v1053 = vadd.f32 %v1017, %v1021
          %v1054 = vadd.f32 %v1018, %v1021
          %v1055 = vmax.f32 %v1023, 0.0
          %v1056 = vmax.f32 %v1024, 0.0
          %v1057 = vmax.f32 %v1025, 0.0
          %v1058 = vmax.f32 %v1026, 0.0
          %v1059 = vmax.f32 %v1027, 0.0
          %v1060 = vmax.f32 %v1028, 0.0
          %v1061 = vmax.f32 %v1029, 0.0
          %v1062 = vmax.f32 %v1030, 0.0
          %v1063 = vmax.f32 %v1031, 0.0
          %v1064 = vmax.f32 %v1032, 0.0
          %v1065 = vmax.f32 %v1033, 0.0
          %v1066 = vmax.f32 %v1034, 0.0
          %v1067 = vmax.f32 %v1035, 0.0
          %v1068 = vmax.f32 %v1036, 0.0
          %v1069 = vmax.f32 %v1037, 0.0
          %v1070 = vmax.f32 %v1038, 0.0
          %v1071 = vmax.f32 %v1039, 0.0
          %v1072 = vmax.f32 %v1040, 0.0
          %v1073 = vmax.f32 %v1041, 0.0
          %v1074 = vmax.f32 %v1042, 0.0
          %v1075 = vmax.f32 %v1043, 0.0
          %v1076 = vmax.f32 %v1044, 0.0
          %v1077 = vmax.f32 %v1045, 0.0
          %v1078 = vmax.f32 %v1046, 0.0
          %v1079 = vmax.f32 %v1047, 0.0
          %v1080 = vmax.f32 %v1048, 0.0
          %v1081 = vmax.f32 %v1049, 0.0
          %v1082 = vmax.f32 %v1050, 0.0
          %v1083 = vmax.f32 %v1051, 0.0
          %v1084 = vmax.f32 %v1052, 0.0
          %v1085 = vmax.f32 %v1053, 0.0
          %v1086 = vmax.f32 %v1054, 0.0
          %v1087 = vpack.c.bf16 %v1055, %v1055
          %v1088 = vpack.c.bf16 %v1056, %v1056
          %v1089 = vpack.c.bf16 %v1057, %v1057
          %v1090 = vpack.c.bf16 %v1058, %v1058
          %v1091 = vpack.c.bf16 %v1059, %v1059
          %v1092 = vpack.c.bf16 %v1060, %v1060
          %v1093 = vpack.c.bf16 %v1061, %v1061
          %v1094 = vpack.c.bf16 %v1062, %v1062
          %v1095 = vpack.c.bf16 %v1063, %v1063
          %v1096 = vpack.c.bf16 %v1064, %v1064
          %v1097 = vpack.c.bf16 %v1065, %v1065
          %v1098 = vpack.c.bf16 %v1066, %v1066
          %v1099 = vpack.c.bf16 %v1067, %v1067
          %v1100 = vpack.c.bf16 %v1068, %v1068
          %v1101 = vpack.c.bf16 %v1069, %v1069
          %v1102 = vpack.c.bf16 %v1070, %v1070
          %v1103 = vpack.c.bf16 %v1071, %v1071
          %v1104 = vpack.c.bf16 %v1072, %v1072
          %v1105 = vpack.c.bf16 %v1073, %v1073
          %v1106 = vpack.c.bf16 %v1074, %v1074
          %v1107 = vpack.c.bf16 %v1075, %v1075
          %v1108 = vpack.c.bf16 %v1076, %v1076
          %v1109 = vpack.c.bf16 %v1077, %v1077
          %v1110 = vpack.c.bf16 %v1078, %v1078
          %v1111 = vpack.c.bf16 %v1079, %v1079
          %v1112 = vpack.c.bf16 %v1080, %v1080
          %v1113 = vpack.c.bf16 %v1081, %v1081
          %v1114 = vpack.c.bf16 %v1082, %v1082
          %v1115 = vpack.c.bf16 %v1083, %v1083
          %v1116 = vpack.c.bf16 %v1084, %v1084
          %v1117 = vpack.c.bf16 %v1085, %v1085
          %v1118 = vpack.c.bf16 %v1086, %v1086
          %vm1119 = vcmask 519168
          %1120 = vst.msk [vmem:[%s314] sm:$0xf] %vm1119, %v1087
          %1121 = vst.msk [vmem:[%s314 + $0x4] sm:$0xf] %vm1119, %v1088
          %1122 = vst.msk [vmem:[%s314 + $0x8] sm:$0xf] %vm1119, %v1089
          %1123 = vst.msk [vmem:[%s314 + $0xc] sm:$0xf] %vm1119, %v1090
          %1124 = vst.msk [vmem:[%s314 + $0x10] sm:$0xf] %vm1119, %v1091
          %1125 = vst.msk [vmem:[%s314 + $0x14] sm:$0xf] %vm1119, %v1092
          %1126 = vst.msk [vmem:[%s314 + $0x18] sm:$0xf] %vm1119, %v1093
          %1127 = vst.msk [vmem:[%s314 + $0x1c] sm:$0xf] %vm1119, %v1094
          %1128 = vst.msk [vmem:[%s314 + $0x20] sm:$0xf] %vm1119, %v1095
          %1129 = vst.msk [vmem:[%s314 + $0x24] sm:$0xf] %vm1119, %v1096
          %1130 = vst.msk [vmem:[%s314 + $0x28] sm:$0xf] %vm1119, %v1097
          %1131 = vst.msk [vmem:[%s314 + $0x2c] sm:$0xf] %vm1119, %v1098
          %1132 = vst.msk [vmem:[%s314 + $0x30] sm:$0xf] %vm1119, %v1099
          %1133 = vst.msk [vmem:[%s314 + $0x34] sm:$0xf] %vm1119, %v1100
          %1134 = vst.msk [vmem:[%s314 + $0x38] sm:$0xf] %vm1119, %v1101
          %1135 = vst.msk [vmem:[%s314 + $0x3c] sm:$0xf] %vm1119, %v1102
          %1136 = vst.msk [vmem:[%s314 + $0x40] sm:$0xf] %vm1119, %v1103
          %1137 = vst.msk [vmem:[%s314 + $0x44] sm:$0xf] %vm1119, %v1104
          %1138 = vst.msk [vmem:[%s314 + $0x48] sm:$0xf] %vm1119, %v1105
          %1139 = vst.msk [vmem:[%s314 + $0x4c] sm:$0xf] %vm1119, %v1106
          %1140 = vst.msk [vmem:[%s314 + $0x50] sm:$0xf] %vm1119, %v1107
          %1141 = vst.msk [vmem:[%s314 + $0x54] sm:$0xf] %vm1119, %v1108
          %1142 = vst.msk [vmem:[%s314 + $0x58] sm:$0xf] %vm1119, %v1109
          %1143 = vst.msk [vmem:[%s314 + $0x5c] sm:$0xf] %vm1119, %v1110
          %1144 = vst.msk [vmem:[%s314 + $0x60] sm:$0xf] %vm1119, %v1111
          %1145 = vst.msk [vmem:[%s314 + $0x64] sm:$0xf] %vm1119, %v1112
          %1146 = vst.msk [vmem:[%s314 + $0x68] sm:$0xf] %vm1119, %v1113
          %1147 = vst.msk [vmem:[%s314 + $0x6c] sm:$0xf] %vm1119, %v1114
          %1148 = vst.msk [vmem:[%s314 + $0x70] sm:$0xf] %vm1119, %v1115
          %1149 = vst.msk [vmem:[%s314 + $0x74] sm:$0xf] %vm1119, %v1116
          %1150 = vst.msk [vmem:[%s314 + $0x78] sm:$0xf] %vm1119, %v1117
          %1151 = vst.msk [vmem:[%s314 + $0x7c] sm:$0xf] %vm1119, %v1118
        $region48: #{tpu_custom_call.1} parent=35 // pred_fallthru
          _
        %s1152 = smul.u32 32, %s23
        %p1153 = scmp.lt.s32.totalorder %s1152, 63
        %s1154 = scalar_select %p1153, %s1152, 63
        %p1155 = scmp.lt.s32.totalorder %s24, 0
        %s1156 = scalar_select %p1155, %s24, 0
        %s1157 = sadd.s32 %s1156, %s1154
        %s1158 = smul.addr %s1157, 4
        %s1159 = scalar_lea.vmem %s4, %s1158
        // Predicated region
        $region49: #{tpu_custom_call.1} parent=35 // pred_check
          %p1160 = pneg %p165
        $region50: #{tpu_custom_call.1} parent=35 // pred_check_branch
          %1162 = sbr.rel (%p1160) target = $region52
        $region51: #{tpu_custom_call.1} parent=35 // pred_region
          %s1163 = smul.u32 32, %s23
        $region52: #{tpu_custom_call.1} parent=35 // pred_fallthru
          _
      $region36: #{tpu_custom_call.1} parent=5 // pred_fallthru
        _
      %p1164 = scmp.le.s32.totalorder 2, %s13
      // Predicated region
      $region53: #{tpu_custom_call.1} parent=5 // pred_check
        %p1165 = pneg %p1164
      $region54: #{tpu_custom_call.1} parent=5 // pred_check_branch
        %1167 = sbr.rel (%p1165) target = $region56
      $region55: #{tpu_custom_call.1} parent=5 // pred_region
        %s1168 = ssub.s32 %s13, 2
        // Predicated region
        $region57: #{tpu_custom_call.1} parent=55 // pred_check
          %p1169 = pneg %p171
        $region58: #{tpu_custom_call.1} parent=55 // pred_check_branch
          %1171 = sbr.rel (%p1169) target = $region60
        $region59: #{tpu_custom_call.1} parent=55 // pred_region
          %s1172 = smul.u32 32, %s26
          %p1173 = scmp.lt.s32.totalorder %s1172, 63
          %s1174 = scalar_select %p1173, %s1172, 63
          %p1175 = scmp.lt.s32.totalorder %s27, 0
          %s1176 = scalar_select %p1175, %s27, 0
          %s1177 = sadd.s32 %s1176, %s1174
          %s1178 = smul.addr %s1177, 4
          %s1179 = scalar_lea.vmem %s4, %s1178
        $region60: #{tpu_custom_call.1} parent=55 // pred_fallthru
          _
      $region56: #{tpu_custom_call.1} parent=5 // pred_fallthru
        _
    $region6: #{tpu_custom_call.1} parent=1 // loop_footer
      %s17 = sadd.s32 1, %s13
    $region7: #{tpu_custom_call.1} parent=1 // loop_footer_branch
      %12 = sbr.rel target = $region3
    $region8: #{tpu_custom_call.1} parent=1 // loop_exit
      _
    %1180 = vsyncpa [#allocation4], 1
    %s1181 = scalar_lea.sflag [#allocation4], 1
    %1182 = vsyncpa %s1181, 1

</llo_original>
